<compile_context>
chip_gen: v7x
topology: tpu7x:2x2x1
jax: 0.10.0
libtpu: 0.0.40
codegen_flags: <defaults>
</compile_context>

<pallas_src>
import functools

import jax
import jax.numpy as jnp
from jax.experimental import pallas as pl
from jax.experimental.pallas import tpu as pltpu


def _sigmoid(v):
    # exp and the approximate reciprocal both execute on the EUP slot,
    # keeping the divide off the VPU (perf-review item).
    return pl.reciprocal(1.0 + jnp.exp(-v), approx=True)


def self_conv_kernel(x_ref, w1_ref, b1_ref, w2_ref, b2_ref, o_ref,
                     xstk_ref, ystk_ref, *, width, img_lanes):
    c, lanes = x_ref.shape                      # (C, bb*H*W)

    x_in = x_ref[...]
    x = x_in.astype(jnp.float32) if x_in.dtype != jnp.float32 else x_in

    # Per-image 'same'-padding masks. Batch rides the lane axis, so positions
    # are taken modulo the per-image lane count to stop taps leaking between
    # images.
    lane = jax.lax.broadcasted_iota(jnp.int32, (1, lanes), 1)
    pos = lane % img_lanes
    keep_up = pos >= width                      # x[h-1] exists
    keep_dn = pos < (img_lanes - width)         # x[h+1] exists
    zero = jnp.float32(0.0)

    # ---- conv1: Conv2d(C, 32, [3,1], padding=[1,0]) — taps stacked along K ----
    xstk_ref[0:c, :] = jnp.where(keep_up, pltpu.roll(x, width, axis=1), zero)
    xstk_ref[c:2 * c, :] = x
    xstk_ref[2 * c:3 * c, :] = jnp.where(
        keep_dn, pltpu.roll(x, lanes - width, axis=1), zero)
    y1 = jnp.dot(w1_ref[...], xstk_ref[...],
                 preferred_element_type=jnp.float32)        # ONE (32,3C)@(3C,L)
    y1 = _sigmoid(y1 + b1_ref[...])                         # (32, L)

    # ---- conv2: Conv2d(32, 1, [3,1], padding=[1,0]) — taps stacked along K ----
    ystk_ref[0:32, :] = jnp.where(keep_up, pltpu.roll(y1, width, axis=1), zero)
    ystk_ref[32:64, :] = y1
    ystk_ref[64:96, :] = jnp.where(
        keep_dn, pltpu.roll(y1, lanes - width, axis=1), zero)
    z = jnp.dot(w2_ref[...], ystk_ref[...],
                preferred_element_type=jnp.float32)         # ONE (1,96)@(96,L)
    gate = _sigmoid(z + b2_ref[0])                          # (1, L)

    # ---- gating: x * sigmoid(conv stack), lane-dense store ----
    o_ref[...] = (x * gate).astype(o_ref.dtype)


def _tpu_generation():
    """Best-effort (num_tensorcores_per_kernel, physical_vmem_bytes)."""
    num_tc = 1
    vmem_phys = 64 * 1024 * 1024            # conservative (v7x physical)
    try:
        info = pltpu.get_tpu_info()
        cap = getattr(info, "vmem_capacity_bytes", None)
        if cap:
            vmem_phys = int(cap)
    except Exception:
        pass
    try:
        kind = getattr(jax.devices()[0], "device_kind", "").lower()
    except Exception:
        kind = ""
    if "v7" in kind or "7x" in kind:
        num_tc = 2                          # v7x: 2 TensorCores per chip
    return num_tc, vmem_phys


def _step_vmem_bytes(c, lanes):
    """Rough f32 VMEM footprint of one grid step (dbl-buffered in/out blocks,
    rolled copies, tap-stacked scratch, y1 tiles, gate)."""
    return (4 * c + 2 * c + 3 * c + 32 + 64 + 96 + 1) * lanes * 4


def _pick_batch_block(n, c, hw, *, num_tc, vmem_budget_bytes):
    per_image = _step_vmem_bytes(c, hw)
    cap = max(1, vmem_budget_bytes // max(per_image, 1))
    best = 1
    for d in range(1, n + 1):
        if n % d != 0 or d > cap:
            continue
        if (d * hw) % 128 != 0 and d != n:      # lane dim must stay 128-aligned
            continue
        steps = n // d
        # v7x (2 TCs): keep an even number of grid steps so neither core idles.
        if num_tc > 1 and n >= num_tc and steps % num_tc != 0:
            continue
        best = d                                # largest valid block wins
    return best


def self_conv(x, w1, b1, w2, b2, *, batch_block=None):
    """x: (N, C, H, W). w1: (32, C, 3, 1), b1: (32,), w2: (1, 32, 3, 1), b2: (1,)."""
    N, C, H, W = x.shape
    HW = H * W

    num_tc, vmem_phys = _tpu_generation()
    if batch_block is None:
        budget = min(vmem_phys // 4, 32 * 1024 * 1024)   # generation-aware scoped budget
        batch_block = _pick_batch_block(N, C, HW, num_tc=num_tc,
                                        vmem_budget_bytes=budget)
    assert N % batch_block == 0
    grid = (N // batch_block,)
    L = batch_block * HW

    # Batch folded into the lane axis (cheap one-off XLA relayout in the wrapper).
    # No dtype upcast here: bf16 inputs would be DMA'd as bf16 and widened in-kernel.
    x_flat = jnp.transpose(x, (1, 0, 2, 3)).reshape(C, N * HW)

    # Taps stacked along the contraction dim (kh-major blocks of C / 32 channels).
    w1p = jnp.transpose(w1[:, :, :, 0], (0, 2, 1)).reshape(32, 3 * C).astype(jnp.float32)
    w2p = jnp.transpose(w2[:, :, :, 0], (0, 2, 1)).reshape(1, 96).astype(jnp.float32)
    b1p = b1.reshape(32, 1).astype(jnp.float32)
    b2p = b2.reshape(1).astype(jnp.float32)                 # scalar -> SMEM

    kernel = functools.partial(self_conv_kernel, width=W, img_lanes=HW)

    # Generation-aware scoped-VMEM limit (generous margin, capped below physical).
    vmem_limit = int(min(max(4 * _step_vmem_bytes(C, L), 16 * 1024 * 1024),
                         vmem_phys // 2))

    out_flat = pl.pallas_call(
        kernel,
        out_shape=jax.ShapeDtypeStruct((C, N * HW), x.dtype),
        grid_spec=pltpu.PrefetchScalarGridSpec(
            num_scalar_prefetch=0,
            grid=grid,
            in_specs=[
                pl.BlockSpec((C, L), lambda g: (0, g)),
                pl.BlockSpec((32, 3 * C), lambda g: (0, 0)),
                pl.BlockSpec((32, 1), lambda g: (0, 0)),
                pl.BlockSpec((1, 96), lambda g: (0, 0)),
                pl.BlockSpec(memory_space=pltpu.MemorySpace.SMEM),
            ],
            out_specs=pl.BlockSpec((C, L), lambda g: (0, g)),
            scratch_shapes=[
                pltpu.VMEM((3 * C, L), jnp.float32),   # stacked conv1 operand
                pltpu.VMEM((96, L), jnp.float32),      # stacked conv2 operand
            ],
        ),
        compiler_params=pltpu.CompilerParams(
            dimension_semantics=("parallel",),
            vmem_limit_bytes=vmem_limit,
        ),
    )(x_flat, w1p, b1p, w2p, b2p)

    return jnp.transpose(out_flat.reshape(C, N, H, W), (1, 0, 2, 3))


def reference_forward(x, w1, b1, w2, b2):
    """Pure-JAX reference matching PyTorch Conv2d semantics (cross-correlation)."""
    dn = ("NCHW", "OIHW", "NCHW")
    y = jax.lax.conv_general_dilated(x, w1, (1, 1), [(1, 1), (0, 0)],
                                     dimension_numbers=dn)
    y = jax.nn.sigmoid(y + b1.reshape(1, -1, 1, 1))
    y = jax.lax.conv_general_dilated(y, w2, (1, 1), [(1, 1), (0, 0)],
                                     dimension_numbers=dn)
    y = jax.nn.sigmoid(y + b2.reshape(1, -1, 1, 1))
    return x * y


if __name__ == "__main__":
    key = jax.random.PRNGKey(0)
    k_x, k_w1, k_b1, k_w2, k_b2 = jax.random.split(key, 5)

    N, C, H, W = 2, 4, 16, 16          # out_ch = 4
    x = jax.random.normal(k_x, (N, C, H, W), jnp.float32)

    # Deterministic xavier_normal-style init (matches the module's shapes).
    fan_in1, fan_out1 = C * 3 * 1, 32 * 3 * 1
    std1 = (2.0 / (fan_in1 + fan_out1)) ** 0.5
    w1 = jax.random.normal(k_w1, (32, C, 3, 1), jnp.float32) * std1
    b1 = jax.random.normal(k_b1, (32,), jnp.float32) * 0.1

    fan_in2, fan_out2 = 32 * 3 * 1, 1 * 3 * 1
    std2 = (2.0 / (fan_in2 + fan_out2)) ** 0.5
    w2 = jax.random.normal(k_w2, (1, 32, 3, 1), jnp.float32) * std2
    b2 = jax.random.normal(k_b2, (1,), jnp.float32) * 0.1

    out = self_conv(x, w1, b1, w2, b2)
    out = jax.block_until_ready(out)

    ref = reference_forward(x, w1, b1, w2, b2)
    assert out.shape == (N, C, H, W)
    # Tolerance accounts for the approximate EUP reciprocal used in the sigmoids;
    # any structural bug (wrong tap / cross-image leak) produces errors far above it.
    assert jnp.allclose(out, ref, atol=5e-3, rtol=5e-3), "mismatch vs reference"

    print("KERNEL_OK")
</pallas_src>

<mosaic_0001>
module attributes {stable_mosaic.version = 11 : i64} {
  func.func @self_conv_kernel(%arg0: i32, %arg1: memref<4x512xf32, #tpu.memory_space<vmem>>, %arg2: memref<32x12xf32, #tpu.memory_space<vmem>>, %arg3: memref<32x1xf32, #tpu.memory_space<vmem>>, %arg4: memref<1x96xf32, #tpu.memory_space<vmem>>, %arg5: memref<1xf32, #tpu.memory_space<smem>>, %arg6: memref<4x512xf32, #tpu.memory_space<vmem>>, %arg7: memref<12x512xf32, #tpu.memory_space<vmem>>, %arg8: memref<96x512xf32, #tpu.memory_space<vmem>>) attributes {dimension_semantics = [#tpu.dimension_semantics<parallel>], iteration_bounds = array<i64: 1>, scalar_prefetch = 0 : i64, scratch_operands = 2 : i64, tpu.core_type = #tpu.core_type<tc>, window_params = [{transform_indices = @transform_0, window_bounds = array<i64: 4, 512>}, {pipeline_mode = #tpu.pipeline_mode<synchronous>, transform_indices = @transform_1, window_bounds = array<i64: 32, 12>}, {pipeline_mode = #tpu.pipeline_mode<synchronous>, transform_indices = @transform_2, window_bounds = array<i64: 32, 1>}, {pipeline_mode = #tpu.pipeline_mode<synchronous>, transform_indices = @transform_3, window_bounds = array<i64: 1, 96>}, {transform_indices = @transform_4, window_bounds = array<i64: 1>}, {transform_indices = @transform_5, window_bounds = array<i64: 4, 512>}]} {
    %c0 = arith.constant 0 : index
    %c0_0 = arith.constant 0 : index
    %0 = vector.load %arg1[%c0, %c0_0] : memref<4x512xf32, #tpu.memory_space<vmem>>, vector<4x512xf32>
    %1 = tpu.iota {dimensions = array<i32: 1>} : vector<1x512xi32>
    %c256_i32 = arith.constant 256 : i32
    %c0_i32 = arith.constant 0 : i32
    %2 = arith.cmpi eq, %c256_i32, %c0_i32 : i32
    %c1_i32 = arith.constant 1 : i32
    %3 = arith.select %2, %c1_i32, %c256_i32 : i32
    %4 = vector.broadcast %3 : i32 to vector<1x512xi32>
    %5 = arith.remsi %1, %4 : vector<1x512xi32>
    %c0_i32_1 = arith.constant 0 : i32
    %6 = vector.broadcast %c0_i32_1 : i32 to vector<1x512xi32>
    %7 = arith.cmpi ne, %5, %6 : vector<1x512xi32>
    %c0_i32_2 = arith.constant 0 : i32
    %8 = vector.broadcast %c0_i32_2 : i32 to vector<1x512xi32>
    %9 = arith.cmpi slt, %5, %8 : vector<1x512xi32>
    %c0_i32_3 = arith.constant 0 : i32
    %10 = arith.cmpi slt, %3, %c0_i32_3 : i32
    %11 = vector.broadcast %10 : i1 to vector<1x512xi1>
    %12 = vector.broadcast %11 : vector<1x512xi1> to vector<1x512xi1>
    %13 = arith.xori %9, %12 : vector<1x512xi1>
    %14 = arith.andi %13, %7 : vector<1x512xi1>
    %15 = vector.broadcast %3 : i32 to vector<1x512xi32>
    %16 = arith.addi %5, %15 : vector<1x512xi32>
    %17 = arith.select %14, %16, %5 : vector<1x512xi1>, vector<1x512xi32>
    %c16_i32 = arith.constant 16 : i32
    %18 = vector.broadcast %c16_i32 : i32 to vector<1x512xi32>
    %19 = arith.cmpi sge, %17, %18 : vector<1x512xi32>
    %c240_i32 = arith.constant 240 : i32
    %20 = vector.broadcast %c240_i32 : i32 to vector<1x512xi32>
    %21 = arith.cmpi slt, %17, %20 : vector<1x512xi32>
    %c16_i32_4 = arith.constant 16 : i32
    %22 = tpu.dynamic_rotate %0 by %c16_i32_4 dim 1 : vector<4x512xf32>, i32 -> vector<4x512xf32>
    %cst = arith.constant 0.000000e+00 : f32
    %23 = vector.shape_cast %19 : vector<1x512xi1> to vector<1x512xi1>
    %24 = vector.broadcast %23 : vector<1x512xi1> to vector<4x512xi1>
    %25 = vector.broadcast %cst : f32 to vector<4x512xf32>
    %26 = arith.select %24, %22, %25 : vector<4x512xi1>, vector<4x512xf32>
    %c0_5 = arith.constant 0 : index
    %c0_6 = arith.constant 0 : index
    %27 = vector.load %arg7[%c0_5, %c0_6] : memref<12x512xf32, #tpu.memory_space<vmem>>, vector<4x512xf32>
    tpu.vector_store %arg7[%c0_5, %c0_6], %26 {strides = array<i32>} : memref<12x512xf32, #tpu.memory_space<vmem>>, vector<4x512xf32>,
    %c4 = arith.constant 4 : index
    %c0_7 = arith.constant 0 : index
    %28 = vector.load %arg7[%c4, %c0_7] : memref<12x512xf32, #tpu.memory_space<vmem>>, vector<4x512xf32>
    tpu.vector_store %arg7[%c4, %c0_7], %0 {strides = array<i32>} : memref<12x512xf32, #tpu.memory_space<vmem>>, vector<4x512xf32>,
    %c496_i32 = arith.constant 496 : i32
    %29 = tpu.dynamic_rotate %0 by %c496_i32 dim 1 : vector<4x512xf32>, i32 -> vector<4x512xf32>
    %cst_8 = arith.constant 0.000000e+00 : f32
    %30 = vector.shape_cast %21 : vector<1x512xi1> to vector<1x512xi1>
    %31 = vector.broadcast %30 : vector<1x512xi1> to vector<4x512xi1>
    %32 = vector.broadcast %cst_8 : f32 to vector<4x512xf32>
    %33 = arith.select %31, %29, %32 : vector<4x512xi1>, vector<4x512xf32>
    %c8 = arith.constant 8 : index
    %c0_9 = arith.constant 0 : index
    %34 = vector.load %arg7[%c8, %c0_9] : memref<12x512xf32, #tpu.memory_space<vmem>>, vector<4x512xf32>
    tpu.vector_store %arg7[%c8, %c0_9], %33 {strides = array<i32>} : memref<12x512xf32, #tpu.memory_space<vmem>>, vector<4x512xf32>,
    %c0_10 = arith.constant 0 : index
    %c0_11 = arith.constant 0 : index
    %35 = vector.load %arg2[%c0_10, %c0_11] : memref<32x12xf32, #tpu.memory_space<vmem>>, vector<32x12xf32>
    %c0_12 = arith.constant 0 : index
    %c0_13 = arith.constant 0 : index
    %36 = vector.load %arg7[%c0_12, %c0_13] : memref<12x512xf32, #tpu.memory_space<vmem>>, vector<12x512xf32>
    %cst_14 = arith.constant dense<0.000000e+00> : vector<32x512xf32>
    %37 = tpu.matmul %35, %36, %cst_14 {dimension_numbers = #tpu.dot_dimension_numbers<[1], [0], [0], [1], [0, 0, 1, 1], [], []>} : vector<32x12xf32>, vector<12x512xf32>, vector<32x512xf32> -> vector<32x512xf32>
    %c0_15 = arith.constant 0 : index
    %c0_16 = arith.constant 0 : index
    %38 = vector.load %arg3[%c0_15, %c0_16] : memref<32x1xf32, #tpu.memory_space<vmem>>, vector<32x1xf32>
    %39 = vector.broadcast %38 : vector<32x1xf32> to vector<32x512xf32>
    %40 = arith.addf %37, %39 : vector<32x512xf32>
    %cst_17 = arith.constant 0.000000e+00 : f32
    %41 = vector.broadcast %cst_17 : f32 to vector<32x512xf32>
    %42 = arith.subf %41, %40 : vector<32x512xf32>
    %43 = math.exp %42 : vector<32x512xf32>
    %cst_18 = arith.constant 1.000000e+00 : f32
    %44 = vector.broadcast %cst_18 : f32 to vector<32x512xf32>
    %45 = arith.addf %44, %43 : vector<32x512xf32>
    %46 = tpu.reciprocal %45 {approx = true} : vector<32x512xf32> -> vector<32x512xf32>
    %c16_i32_19 = arith.constant 16 : i32
    %47 = tpu.dynamic_rotate %46 by %c16_i32_19 dim 1 : vector<32x512xf32>, i32 -> vector<32x512xf32>
    %cst_20 = arith.constant 0.000000e+00 : f32
    %48 = vector.shape_cast %19 : vector<1x512xi1> to vector<1x512xi1>
    %49 = vector.broadcast %48 : vector<1x512xi1> to vector<32x512xi1>
    %50 = vector.broadcast %cst_20 : f32 to vector<32x512xf32>
    %51 = arith.select %49, %47, %50 : vector<32x512xi1>, vector<32x512xf32>
    %c0_21 = arith.constant 0 : index
    %c0_22 = arith.constant 0 : index
    %52 = vector.load %arg8[%c0_21, %c0_22] : memref<96x512xf32, #tpu.memory_space<vmem>>, vector<32x512xf32>
    tpu.vector_store %arg8[%c0_21, %c0_22], %51 {strides = array<i32>} : memref<96x512xf32, #tpu.memory_space<vmem>>, vector<32x512xf32>,
    %c32 = arith.constant 32 : index
    %c0_23 = arith.constant 0 : index
    %53 = vector.load %arg8[%c32, %c0_23] : memref<96x512xf32, #tpu.memory_space<vmem>>, vector<32x512xf32>
    tpu.vector_store %arg8[%c32, %c0_23], %46 {strides = array<i32>} : memref<96x512xf32, #tpu.memory_space<vmem>>, vector<32x512xf32>,
    %c496_i32_24 = arith.constant 496 : i32
    %54 = tpu.dynamic_rotate %46 by %c496_i32_24 dim 1 : vector<32x512xf32>, i32 -> vector<32x512xf32>
    %cst_25 = arith.constant 0.000000e+00 : f32
    %55 = vector.shape_cast %21 : vector<1x512xi1> to vector<1x512xi1>
    %56 = vector.broadcast %55 : vector<1x512xi1> to vector<32x512xi1>
    %57 = vector.broadcast %cst_25 : f32 to vector<32x512xf32>
    %58 = arith.select %56, %54, %57 : vector<32x512xi1>, vector<32x512xf32>
    %c64 = arith.constant 64 : index
    %c0_26 = arith.constant 0 : index
    %59 = vector.load %arg8[%c64, %c0_26] : memref<96x512xf32, #tpu.memory_space<vmem>>, vector<32x512xf32>
    tpu.vector_store %arg8[%c64, %c0_26], %58 {strides = array<i32>} : memref<96x512xf32, #tpu.memory_space<vmem>>, vector<32x512xf32>,
    %c0_27 = arith.constant 0 : index
    %c0_28 = arith.constant 0 : index
    %60 = vector.load %arg4[%c0_27, %c0_28] : memref<1x96xf32, #tpu.memory_space<vmem>>, vector<1x96xf32>
    %c0_29 = arith.constant 0 : index
    %c0_30 = arith.constant 0 : index
    %61 = vector.load %arg8[%c0_29, %c0_30] : memref<96x512xf32, #tpu.memory_space<vmem>>, vector<96x512xf32>
    %cst_31 = arith.constant dense<0.000000e+00> : vector<1x512xf32>
    %62 = tpu.matmul %60, %61, %cst_31 {dimension_numbers = #tpu.dot_dimension_numbers<[1], [0], [0], [1], [0, 0, 1, 1], [], []>} : vector<1x96xf32>, vector<96x512xf32>, vector<1x512xf32> -> vector<1x512xf32>
    %c0_32 = arith.constant 0 : index
    %63 = memref.load %arg5[%c0_32] : memref<1xf32, #tpu.memory_space<smem>>
    %64 = vector.broadcast %63 : f32 to vector<1x512xf32>
    %65 = arith.addf %62, %64 : vector<1x512xf32>
    %cst_33 = arith.constant 0.000000e+00 : f32
    %66 = vector.broadcast %cst_33 : f32 to vector<1x512xf32>
    %67 = arith.subf %66, %65 : vector<1x512xf32>
    %68 = math.exp %67 : vector<1x512xf32>
    %cst_34 = arith.constant 1.000000e+00 : f32
    %69 = vector.broadcast %cst_34 : f32 to vector<1x512xf32>
    %70 = arith.addf %69, %68 : vector<1x512xf32>
    %71 = tpu.reciprocal %70 {approx = true} : vector<1x512xf32> -> vector<1x512xf32>
    %72 = vector.broadcast %71 : vector<1x512xf32> to vector<4x512xf32>
    %73 = arith.mulf %0, %72 : vector<4x512xf32>
    %c0_35 = arith.constant 0 : index
    %c0_36 = arith.constant 0 : index
    %74 = vector.load %arg6[%c0_35, %c0_36] : memref<4x512xf32, #tpu.memory_space<vmem>>, vector<4x512xf32>
    tpu.vector_store %arg6[%c0_35, %c0_36], %73 {strides = array<i32>} : memref<4x512xf32, #tpu.memory_space<vmem>>, vector<4x512xf32>,
    return
  }
  func.func @transform_0(%arg0: i32) -> (i32, i32) {
    %c0_i32 = arith.constant 0 : i32
    %c0_i32_0 = arith.constant 0 : i32
    return %c0_i32, %arg0 : i32, i32
  }
  func.func @transform_1(%arg0: i32) -> (i32, i32) {
    %c0_i32 = arith.constant 0 : i32
    %c0_i32_0 = arith.constant 0 : i32
    %c0_i32_1 = arith.constant 0 : i32
    return %c0_i32, %c0_i32_0 : i32, i32
  }
  func.func @transform_2(%arg0: i32) -> (i32, i32) {
    %c0_i32 = arith.constant 0 : i32
    %c0_i32_0 = arith.constant 0 : i32
    %c0_i32_1 = arith.constant 0 : i32
    return %c0_i32, %c0_i32_0 : i32, i32
  }
  func.func @transform_3(%arg0: i32) -> (i32, i32) {
    %c0_i32 = arith.constant 0 : i32
    %c0_i32_0 = arith.constant 0 : i32
    %c0_i32_1 = arith.constant 0 : i32
    return %c0_i32, %c0_i32_0 : i32, i32
  }
  func.func @transform_4(%arg0: i32) -> i32 {
    %c0_i32 = arith.constant 0 : i32
    %c0_i32_0 = arith.constant 0 : i32
    return %c0_i32 : i32
  }
  func.func @transform_5(%arg0: i32) -> (i32, i32) {
    %c0_i32 = arith.constant 0 : i32
    %c0_i32_0 = arith.constant 0 : i32
    return %c0_i32, %arg0 : i32, i32
  }
}

</mosaic_0001>

<llo_original>
// kernel: tpu_custom_call.1
$region0: #{tpu_custom_call.1}
  #allocation0 [shape = 'u32[]', space=smem, size = 0x4, offset = 0x4, fixed_abs, tag = 'smem constant byte address 0x4 - core index']
  #allocation1 [shape = 'u32[144,128]{1,0:T(1,128)}', space=vmem, size = 0x12000, scoped, tag = 'internal scratch']
  #allocation2 [shape = 'f32[12,512]{1,0:T(8,128)}', space=vmem, size = 0x8000, scoped, tag = 'scratch operand']
  #allocation3 [shape = 'f32[96,512]{1,0:T(8,128)}', space=vmem, size = 0x30000, scoped, tag = 'scratch operand']
  #allocation4 [shape = 'f32[1]{0:T(128)S(6)}', space=smem, size = 0x200, scoped, tag = 'scoped memory for tpu_custom_call.1']
  %s0 = inlined_call_operand.vmem [shape: f32[4,512], index: 0, kind: input, shape index: {}]
  %s1 = inlined_call_operand.vmem [shape: f32[32,12], index: 1, kind: input, shape index: {}]
  %s2 = inlined_call_operand.vmem [shape: f32[32,1], index: 2, kind: input, shape index: {}]
  %s3 = inlined_call_operand.vmem [shape: f32[1,96], index: 3, kind: input, shape index: {}]
  %s4 = inlined_call_operand.<no memory space> [shape: f32[1], index: 4, kind: input, shape index: {}]
  %s5 = inlined_call_operand.hbm [shape: f32[4,512], index: 5, kind: output, shape index: {}]
  %s6 = sld [smem:[#allocation0]]
  $region30: #{tpu_custom_call.1} parent=0
    _
  %s8 = ssub.s32 1, %s6
  %s9 = scalar_select 0, %s8, %s6
  %10 = sst [smem:[#allocation4]] %s4
  $region1: #{tpu_custom_call.1} parent=0
    #allocation5 [shape = 'u8[8192]{0}', space=vmem, size = 0x2000, scoped, tag = 'output window, operand 0, single buffered']
    #allocation6 [shape = 's32[1]{0}', space=sflag, size = 0x4, scoped, tag = 'scoped memory for tpu_custom_call.1']
    %11 = vsyncpa [#allocation6], 0
    // Predicated region
    $region2: #{tpu_custom_call.1} parent=1 // pred_check
      _
    $region3: #{tpu_custom_call.1} parent=1 // pred_check_branch
      %13 = sbr.rel (0) target = $region5
    $region4: #{tpu_custom_call.1} parent=1 // pred_region
      _
    $region5: #{tpu_custom_call.1} parent=1 // pred_fallthru
      _
    // Predicated region
    $region6: #{tpu_custom_call.1} parent=1 // pred_check
      _
    $region7: #{tpu_custom_call.1} parent=1 // pred_check_branch
      %15 = sbr.rel (0) target = $region9
    $region8: #{tpu_custom_call.1} parent=1 // pred_region
      _
    $region9: #{tpu_custom_call.1} parent=1 // pred_fallthru
      _
    // Predicated region
    $region10: #{tpu_custom_call.1} parent=1 // pred_check
      _
    $region11: #{tpu_custom_call.1} parent=1 // pred_check_branch
      %17 = sbr.rel (0) target = $region13
    $region12: #{tpu_custom_call.1} parent=1 // pred_region
      _
    $region13: #{tpu_custom_call.1} parent=1 // pred_fallthru
      _
    // Predicated region
    $region14: #{tpu_custom_call.1} parent=1 // pred_check
      _
    $region15: #{tpu_custom_call.1} parent=1 // pred_check_branch
      %19 = sbr.rel (0) target = $region17
    $region16: #{tpu_custom_call.1} parent=1 // pred_region
      _
    $region17: #{tpu_custom_call.1} parent=1 // pred_fallthru
      _
    // Predicated region
    $region18: #{tpu_custom_call.1} parent=1 // pred_check
      _
    $region19: #{tpu_custom_call.1} parent=1 // pred_check_branch
      %21 = sbr.rel (0) target = $region21
    $region20: #{tpu_custom_call.1} parent=1 // pred_region
      _
    $region21: #{tpu_custom_call.1} parent=1 // pred_fallthru
      _
    %v22 = vld [vmem:[%s0] sm:$0xff]
    %v23 = vld [vmem:[%s0 + $0x8] sm:$0xff]
    %v24 = vlaneseq
    %v25 = vand.u32 %v24, 127
    %v26 = vadd.s32 %v25, 128
    %v27 = vadd.s32 %v25, 256
    %v28 = vadd.s32 %v25, 384
    %vm29 = vcmp.lt.s32.totalorder %v25, 0
    %v30 = vsub.s32 0, %v25
    %v31 = vsel %vm29, %v30, %v25
    %v32 = vshrl.u32 %v31, 8
    %v33 = vand.u32 %v31, 255
    %v34 = vsub.s32 0, %v33
    %v35 = vsel %vm29, %v34, %v33
    %vm36 = vcmp.lt.s32.totalorder %v26, 0
    %v37 = vsub.s32 0, %v26
    %v38 = vsel %vm36, %v37, %v26
    %v39 = vshrl.u32 %v38, 8
    %v40 = vand.u32 %v38, 255
    %v41 = vsub.s32 0, %v40
    %v42 = vsel %vm36, %v41, %v40
    %vm43 = vcmp.lt.s32.totalorder %v27, 0
    %v44 = vsub.s32 0, %v27
    %v45 = vsel %vm43, %v44, %v27
    %v46 = vshrl.u32 %v45, 8
    %v47 = vand.u32 %v45, 255
    %v48 = vsub.s32 0, %v47
    %v49 = vsel %vm43, %v48, %v47
    %vm50 = vcmp.lt.s32.totalorder %v28, 0
    %v51 = vsub.s32 0, %v28
    %v52 = vsel %vm50, %v51, %v28
    %v53 = vshrl.u32 %v52, 8
    %v54 = vand.u32 %v52, 255
    %v55 = vsub.s32 0, %v54
    %v56 = vsel %vm50, %v55, %v54
    %vm57 = vcmp.ne.s32.totalorder %v35, 0
    %vm58 = vcmp.ne.s32.totalorder %v42, 0
    %vm59 = vcmp.ne.s32.totalorder %v49, 0
    %vm60 = vcmp.ne.s32.totalorder %v56, 0
    %vm61 = vcmp.lt.s32.totalorder %v35, 0
    %vm62 = vcmp.lt.s32.totalorder %v42, 0
    %vm63 = vcmp.lt.s32.totalorder %v49, 0
    %vm64 = vcmp.lt.s32.totalorder %v56, 0
    %vm65 = vmand %vm61, %vm57
    %vm66 = vmand %vm62, %vm58
    %vm67 = vmand %vm63, %vm59
    %vm68 = vmand %vm64, %vm60
    %v69 = vadd.s32 %v35, 256
    %v70 = vadd.s32 %v42, 256
    %v71 = vadd.s32 %v49, 256
    %v72 = vadd.s32 %v56, 256
    %v73 = vsel %vm65, %v69, %v35
    %v74 = vsel %vm66, %v70, %v42
    %v75 = vsel %vm67, %v71, %v49
    %v76 = vsel %vm68, %v72, %v56
    %vm77 = vcmp.ge.s32.totalorder %v73, 16
    %vm78 = vcmp.ge.s32.totalorder %v74, 16
    %vm79 = vcmp.ge.s32.totalorder %v75, 16
    %vm80 = vcmp.ge.s32.totalorder %v76, 16
    %vm81 = vcmp.lt.s32.totalorder %v73, 240
    %vm82 = vcmp.lt.s32.totalorder %v74, 240
    %vm83 = vcmp.lt.s32.totalorder %v75, 240
    %vm84 = vcmp.lt.s32.totalorder %v76, 240
    %v87 = vcombine.high %v22, %v22
    %v88 = vcombine.high %v23, %v23
    %91 = vrot.lane.b32.xlu0 %v22, 16
    %v92 = vpop.permute.xlu0 %91
    %93 = vrot.lane.b32.xlu0 %v87, 16
    %v94 = vpop.permute.xlu0 %93
    %95 = vrot.lane.b32.xlu0 %v23, 16
    %v96 = vpop.permute.xlu0 %95
    %97 = vrot.lane.b32.xlu0 %v88, 16
    %v98 = vpop.permute.xlu0 %97
    %vm99 = vcmp.lt.s32.totalorder %v25, 16
    %v100 = vsel %vm99, %v96, %v98
    %v101 = vsel %vm99, %v94, %v96
    %v102 = vsel %vm99, %v92, %v94
    %v103 = vsel %vm99, %v98, %v92
    %v104 = vsel %vm77, 1, 0
    %v105 = vsel %vm78, 1, 0
    %v106 = vsel %vm79, 1, 0
    %v107 = vsel %vm80, 1, 0
    %vm108 = vcmp.eq.s32.totalorder %v104, 1
    %vm109 = vcmp.eq.s32.totalorder %v105, 1
    %vm110 = vcmp.eq.s32.totalorder %v106, 1
    %vm111 = vcmp.eq.s32.totalorder %v107, 1
    %v112 = vsel %vm108, %v103, 0.0
    %v113 = vsel %vm109, %v102, 0.0
    %v114 = vsel %vm110, %v101, 0.0
    %v115 = vsel %vm111, %v100, 0.0
    %116 = vst [vmem:[#allocation2] sm:$0xf] %v112
    %117 = vst [vmem:[#allocation2 + $0x8] sm:$0xf] %v113
    %118 = vst [vmem:[#allocation2 + $0x10] sm:$0xf] %v114
    %119 = vst [vmem:[#allocation2 + $0x18] sm:$0xf] %v115
    %v120 = vcombine.low %v22, %v22
    %v121 = vcombine.low %v23, %v23
    %124 = vst [vmem:[#allocation2] sm:$0xf0] %v120
    %125 = vst [vmem:[#allocation2 + $0x8] sm:$0xf0] %v22
    %126 = vst [vmem:[#allocation2 + $0x10] sm:$0xf0] %v121
    %127 = vst [vmem:[#allocation2 + $0x18] sm:$0xf0] %v23
    %128 = vrot.lane.b32.xlu0 %v22, 112
    %v129 = vpop.permute.xlu0 %128
    %130 = vrot.lane.b32.xlu0 %v87, 112
    %v131 = vpop.permute.xlu0 %130
    %132 = vrot.lane.b32.xlu0 %v23, 112
    %v133 = vpop.permute.xlu0 %132
    %134 = vrot.lane.b32.xlu0 %v88, 112
    %v135 = vpop.permute.xlu0 %134
    %vm136 = vcmp.lt.s32.totalorder %v25, 112
    %v137 = vsel %vm136, %v133, %v135
    %v138 = vsel %vm136, %v131, %v133
    %v139 = vsel %vm136, %v129, %v131
    %v140 = vsel %vm136, %v135, %v129
    %v141 = vsel %vm81, 1, 0
    %v142 = vsel %vm82, 1, 0
    %v143 = vsel %vm83, 1, 0
    %v144 = vsel %vm84, 1, 0
    %vm145 = vcmp.eq.s32.totalorder %v141, 1
    %vm146 = vcmp.eq.s32.totalorder %v142, 1
    %vm147 = vcmp.eq.s32.totalorder %v143, 1
    %vm148 = vcmp.eq.s32.totalorder %v144, 1
    %v149 = vsel %vm145, %v139, 0.0
    %v150 = vsel %vm146, %v138, 0.0
    %v151 = vsel %vm147, %v137, 0.0
    %v152 = vsel %vm148, %v140, 0.0
    %153 = vst [vmem:[#allocation2 + $0x20] sm:$0xf] %v149
    %154 = vst [vmem:[#allocation2 + $0x28] sm:$0xf] %v150
    %155 = vst [vmem:[#allocation2 + $0x30] sm:$0xf] %v151
    %156 = vst [vmem:[#allocation2 + $0x38] sm:$0xf] %v152
    %v157 = vld [vmem:[%s1] sm:$0xff]
    %v158 = vld [vmem:[%s1 + $0x8] sm:$0xff]
    %v159 = vld [vmem:[%s1 + $0x10] sm:$0xff]
    %v160 = vld [vmem:[%s1 + $0x18] sm:$0xff]
    %v161 = vld [vmem:[#allocation2] sm:$0xff]
    %v162 = vld [vmem:[#allocation2 + $0x8] sm:$0xff]
    %v163 = vld [vmem:[#allocation2 + $0x10] sm:$0xff]
    %v164 = vld [vmem:[#allocation2 + $0x18] sm:$0xff]
    %v165 = vld [vmem:[#allocation2 + $0x20] sm:$0xf]
    %v166 = vld [vmem:[#allocation2 + $0x28] sm:$0xf]
    %v167 = vld [vmem:[#allocation2 + $0x30] sm:$0xf]
    %v168 = vld [vmem:[#allocation2 + $0x38] sm:$0xf]
    %v169 = vld [vmem:[%s2] sm:$0xff]
    %v170 = vld [vmem:[%s2 + $0x8] sm:$0xff]
    %v171 = vld [vmem:[%s2 + $0x10] sm:$0xff]
    %v172 = vld [vmem:[%s2 + $0x18] sm:$0xff]
    %174 = vset.pattern.permute.xlu0 0
    %175 = vperm.xlu0 %174, %v169
    %v176 = vpop.permute.xlu0 %175
    %179 = vset.pattern.permute.xlu0 0
    %180 = vperm.xlu0 %179, %v170
    %v181 = vpop.permute.xlu0 %180
    %184 = vset.pattern.permute.xlu0 0
    %185 = vperm.xlu0 %184, %v171
    %v186 = vpop.permute.xlu0 %185
    %189 = vset.pattern.permute.xlu0 0
    %190 = vperm.xlu0 %189, %v172
    %v191 = vpop.permute.xlu0 %190
    %vm193 = vcmask 97280
    %v195 = vsel %vm193, %v157, 0
    %v198 = vsel %vm193, %v158, 0
    %v201 = vsel %vm193, %v159, 0
    %v204 = vsel %vm193, %v160, 0
    %vm206 = vcmask 1043456
    %v208 = vsel %vm206, %v165, 0
    %v211 = vsel %vm206, %v166, 0
    %v214 = vsel %vm206, %v167, 0
    %v217 = vsel %vm206, %v168, 0
    %219 = vmatprep.subr.mxu0 %v162
    %220 = vmatpush1.msra.mxu0 %v161
    %221 = vmatprep.subr.mxu0 %v211
    %222 = vmatpush1.msra.mxu0 %v208
    %223 = vmatprep.subr.mxu0 0.0
    %224 = vmatpush1.msra.mxu0 0.0
    %225 = vmatprep.subr.mxu0 0.0
    %226 = vmatpush1.msra.mxu0 0.0
    %227 = vmatprep.subr.mxu0 0.0
    %228 = vmatpush1.msra.mxu0 0.0
    %229 = vmatprep.subr.mxu0 0.0
    %230 = vmatpush1.msra.mxu0 0.0
    %231 = vmatprep.subr.mxu0 0.0
    %232 = vmatpush1.msra.mxu0 0.0
    %233 = vmatprep.subr.mxu0 0.0
    %234 = vmatpush1.msra.mxu0 0.0
    %235 = vmatprep.subr.mxu0 0.0
    %236 = vmatpush1.msra.mxu0 0.0
    %237 = vmatprep.subr.mxu0 0.0
    %238 = vmatpush1.msra.mxu0 0.0
    %239 = vmatprep.subr.mxu0 0.0
    %240 = vmatpush1.msra.mxu0 0.0
    %241 = vmatprep.subr.mxu0 0.0
    %242 = vmatpush1.msra.mxu0 0.0
    %243 = vmatprep.subr.mxu0 0.0
    %244 = vmatpush1.msra.mxu0 0.0
    %245 = vmatprep.subr.mxu0 0.0
    %246 = vmatpush1.msra.mxu0 0.0
    %247 = vmatprep.subr.mxu0 0.0
    %248 = vmatpush1.msra.mxu0 0.0
    %249 = vmatprep.subr.mxu0 0.0
    %250 = vmatpush1.msra.mxu0 0.0
    %251 = vmatprep.subr.mxu0 0.0
    %252 = vmatpush1.msra.mxu0 0.0
    %253 = vmatprep.subr.mxu0 0.0
    %254 = vmatpush1.msra.mxu0 0.0
    %255 = vmatprep.subr.mxu0 0.0
    %256 = vmatpush1.msra.mxu0 0.0
    %257 = vmatprep.subr.mxu0 0.0
    %258 = vmatpush1.msra.mxu0 0.0
    %259 = vmatprep.subr.mxu0 0.0
    %260 = vmatpush1.msra.mxu0 0.0
    %261 = vmatprep.subr.mxu0 0.0
    %262 = vmatpush1.msra.mxu0 0.0
    %263 = vmatprep.subr.mxu0 0.0
    %264 = vmatpush1.msra.mxu0 0.0
    %265 = vmatprep.subr.mxu0 0.0
    %266 = vmatpush1.msra.mxu0 0.0
    %267 = vmatprep.subr.mxu0 0.0
    %268 = vmatpush1.msra.mxu0 0.0
    %269 = vmatprep.subr.mxu0 0.0
    %270 = vmatpush1.msra.mxu0 0.0
    %271 = vmatprep.subr.mxu0 0.0
    %272 = vmatpush1.msra.mxu0 0.0
    %273 = vmatprep.subr.mxu0 0.0
    %274 = vmatpush1.msra.mxu0 0.0
    %275 = vmatprep.subr.mxu0 0.0
    %276 = vmatpush1.msra.mxu0 0.0
    %277 = vmatprep.subr.mxu0 0.0
    %278 = vmatpush1.msra.mxu0 0.0
    %279 = vmatprep.subr.mxu0 0.0
    %280 = vmatpush1.msra.mxu0 0.0
    %281 = vmatprep.subr.mxu0 0.0
    %282 = vmatpush1.msra.mxu0 0.0
    %283 = vmatprep.mubr.f32.mxu0 0.0
    %284 = vmatmul.mubr.f32.gmra.mrb[0].mxu0 %v195
    %v285 = vpop.f32.mrb[0].mxu0
    %v286 = vadd.f32 %v176, %v285
    %v287 = vpop.f32.mrb[0].mxu0
    %v288 = vadd.f32 %v176, %v287
    %289 = vmatprep.mubr.f32.mxu0 0.0
    %290 = vmatmul.mubr.f32.gmra.mrb[0].mxu0 %v198
    %v291 = vpop.f32.mrb[0].mxu0
    %v292 = vadd.f32 %v181, %v291
    %v293 = vpop.f32.mrb[0].mxu0
    %v294 = vadd.f32 %v181, %v293
    %295 = vmatprep.mubr.f32.mxu0 0.0
    %296 = vmatmul.mubr.f32.gmra.mrb[0].mxu0 %v201
    %v297 = vpop.f32.mrb[0].mxu0
    %v298 = vadd.f32 %v186, %v297
    %v299 = vpop.f32.mrb[0].mxu0
    %v300 = vadd.f32 %v186, %v299
    %301 = vmatprep.mubr.f32.mxu0 0.0
    %302 = vmatmul.mubr.f32.gmra.mrb[0].mxu0 %v204
    %v303 = vpop.f32.mrb[0].mxu0
    %v304 = vadd.f32 %v191, %v303
    %v305 = vpop.f32.mrb[0].mxu0
    %v306 = vadd.f32 %v191, %v305
    %307 = vdwg.mxu0
    %308 = vmatprep.subr.mxu0 %v164
    %309 = vmatpush1.msra.mxu0 %v163
    %310 = vmatprep.subr.mxu0 %v217
    %311 = vmatpush1.msra.mxu0 %v214
    %312 = vmatprep.subr.mxu0 0.0
    %313 = vmatpush1.msra.mxu0 0.0
    %314 = vmatprep.subr.mxu0 0.0
    %315 = vmatpush1.msra.mxu0 0.0
    %316 = vmatprep.subr.mxu0 0.0
    %317 = vmatpush1.msra.mxu0 0.0
    %318 = vmatprep.subr.mxu0 0.0
    %319 = vmatpush1.msra.mxu0 0.0
    %320 = vmatprep.subr.mxu0 0.0
    %321 = vmatpush1.msra.mxu0 0.0
    %322 = vmatprep.subr.mxu0 0.0
    %323 = vmatpush1.msra.mxu0 0.0
    %324 = vmatprep.subr.mxu0 0.0
    %325 = vmatpush1.msra.mxu0 0.0
    %326 = vmatprep.subr.mxu0 0.0
    %327 = vmatpush1.msra.mxu0 0.0
    %328 = vmatprep.subr.mxu0 0.0
    %329 = vmatpush1.msra.mxu0 0.0
    %330 = vmatprep.subr.mxu0 0.0
    %331 = vmatpush1.msra.mxu0 0.0
    %332 = vmatprep.subr.mxu0 0.0
    %333 = vmatpush1.msra.mxu0 0.0
    %334 = vmatprep.subr.mxu0 0.0
    %335 = vmatpush1.msra.mxu0 0.0
    %336 = vmatprep.subr.mxu0 0.0
    %337 = vmatpush1.msra.mxu0 0.0
    %338 = vmatprep.subr.mxu0 0.0
    %339 = vmatpush1.msra.mxu0 0.0
    %340 = vmatprep.subr.mxu0 0.0
    %341 = vmatpush1.msra.mxu0 0.0
    %342 = vmatprep.subr.mxu0 0.0
    %343 = vmatpush1.msra.mxu0 0.0
    %344 = vmatprep.subr.mxu0 0.0
    %345 = vmatpush1.msra.mxu0 0.0
    %346 = vmatprep.subr.mxu0 0.0
    %347 = vmatpush1.msra.mxu0 0.0
    %348 = vmatprep.subr.mxu0 0.0
    %349 = vmatpush1.msra.mxu0 0.0
    %350 = vmatprep.subr.mxu0 0.0
    %351 = vmatpush1.msra.mxu0 0.0
    %352 = vmatprep.subr.mxu0 0.0
    %353 = vmatpush1.msra.mxu0 0.0
    %354 = vmatprep.subr.mxu0 0.0
    %355 = vmatpush1.msra.mxu0 0.0
    %356 = vmatprep.subr.mxu0 0.0
    %357 = vmatpush1.msra.mxu0 0.0
    %358 = vmatprep.subr.mxu0 0.0
    %359 = vmatpush1.msra.mxu0 0.0
    %360 = vmatprep.subr.mxu0 0.0
    %361 = vmatpush1.msra.mxu0 0.0
    %362 = vmatprep.subr.mxu0 0.0
    %363 = vmatpush1.msra.mxu0 0.0
    %364 = vmatprep.subr.mxu0 0.0
    %365 = vmatpush1.msra.mxu0 0.0
    %366 = vmatprep.subr.mxu0 0.0
    %367 = vmatpush1.msra.mxu0 0.0
    %368 = vmatprep.subr.mxu0 0.0
    %369 = vmatpush1.msra.mxu0 0.0
    %370 = vmatprep.subr.mxu0 0.0
    %371 = vmatpush1.msra.mxu0 0.0
    %372 = vmatprep.mubr.f32.mxu0 0.0
    %373 = vmatmul.mubr.f32.gmra.mrb[0].mxu0 %v195
    %v374 = vpop.f32.mrb[0].mxu0
    %v375 = vadd.f32 %v176, %v374
    %v376 = vpop.f32.mrb[0].mxu0
    %v377 = vadd.f32 %v176, %v376
    %378 = vmatprep.mubr.f32.mxu0 0.0
    %379 = vmatmul.mubr.f32.gmra.mrb[0].mxu0 %v198
    %v380 = vpop.f32.mrb[0].mxu0
    %v381 = vadd.f32 %v181, %v380
    %v382 = vpop.f32.mrb[0].mxu0
    %v383 = vadd.f32 %v181, %v382
    %384 = vmatprep.mubr.f32.mxu0 0.0
    %385 = vmatmul.mubr.f32.gmra.mrb[0].mxu0 %v201
    %v386 = vpop.f32.mrb[0].mxu0
    %v387 = vadd.f32 %v186, %v386
    %v388 = vpop.f32.mrb[0].mxu0
    %v389 = vadd.f32 %v186, %v388
    %390 = vmatprep.mubr.f32.mxu0 0.0
    %391 = vmatmul.mubr.f32.gmra.mrb[0].mxu0 %v204
    %v392 = vpop.f32.mrb[0].mxu0
    %v393 = vadd.f32 %v191, %v392
    %v394 = vpop.f32.mrb[0].mxu0
    %v395 = vadd.f32 %v191, %v394
    %396 = vdwg.mxu0
    %v397 = vsub.f32 0.0, %v286
    %v398 = vsub.f32 0.0, %v288
    %v399 = vsub.f32 0.0, %v375
    %v400 = vsub.f32 0.0, %v377
    %v401 = vsub.f32 0.0, %v292
    %v402 = vsub.f32 0.0, %v294
    %v403 = vsub.f32 0.0, %v381
    %v404 = vsub.f32 0.0, %v383
    %v405 = vsub.f32 0.0, %v298
    %v406 = vsub.f32 0.0, %v300
    %v407 = vsub.f32 0.0, %v387
    %v408 = vsub.f32 0.0, %v389
    %v409 = vsub.f32 0.0, %v304
    %v410 = vsub.f32 0.0, %v306
    %v411 = vsub.f32 0.0, %v393
    %v412 = vsub.f32 0.0, %v395
    %v413 = vmul.f32 %v397, 1.442695
    %v414 = vpow.pop %v413
    %v415 = vmul.f32 %v398, 1.442695
    %v416 = vpow.pop %v415
    %v417 = vmul.f32 %v399, 1.442695
    %v418 = vpow.pop %v417
    %v419 = vmul.f32 %v400, 1.442695
    %v420 = vpow.pop %v419
    %v421 = vmul.f32 %v401, 1.442695
    %v422 = vpow.pop %v421
    %v423 = vmul.f32 %v402, 1.442695
    %v424 = vpow.pop %v423
    %v425 = vmul.f32 %v403, 1.442695
    %v426 = vpow.pop %v425
    %v427 = vmul.f32 %v404, 1.442695
    %v428 = vpow.pop %v427
    %v429 = vmul.f32 %v405, 1.442695
    %v430 = vpow.pop %v429
    %v431 = vmul.f32 %v406, 1.442695
    %v432 = vpow.pop %v431
    %v433 = vmul.f32 %v407, 1.442695
    %v434 = vpow.pop %v433
    %v435 = vmul.f32 %v408, 1.442695
    %v436 = vpow.pop %v435
    %v437 = vmul.f32 %v409, 1.442695
    %v438 = vpow.pop %v437
    %v439 = vmul.f32 %v410, 1.442695
    %v440 = vpow.pop %v439
    %v441 = vmul.f32 %v411, 1.442695
    %v442 = vpow.pop %v441
    %v443 = vmul.f32 %v412, 1.442695
    %v444 = vpow.pop %v443
    %v445 = vadd.f32 %v414, 1.0
    %v446 = vadd.f32 %v416, 1.0
    %v447 = vadd.f32 %v418, 1.0
    %v448 = vadd.f32 %v420, 1.0
    %v449 = vadd.f32 %v422, 1.0
    %v450 = vadd.f32 %v424, 1.0
    %v451 = vadd.f32 %v426, 1.0
    %v452 = vadd.f32 %v428, 1.0
    %v453 = vadd.f32 %v430, 1.0
    %v454 = vadd.f32 %v432, 1.0
    %v455 = vadd.f32 %v434, 1.0
    %v456 = vadd.f32 %v436, 1.0
    %v457 = vadd.f32 %v438, 1.0
    %v458 = vadd.f32 %v440, 1.0
    %v459 = vadd.f32 %v442, 1.0
    %v460 = vadd.f32 %v444, 1.0
    %v461 = vrcp.pop %v445
    %v462 = vrcp.pop %v446
    %v463 = vrcp.pop %v447
    %v464 = vrcp.pop %v448
    %v465 = vrcp.pop %v449
    %v466 = vrcp.pop %v450
    %v467 = vrcp.pop %v451
    %v468 = vrcp.pop %v452
    %v469 = vrcp.pop %v453
    %v470 = vrcp.pop %v454
    %v471 = vrcp.pop %v455
    %v472 = vrcp.pop %v456
    %v473 = vrcp.pop %v457
    %v474 = vrcp.pop %v458
    %v475 = vrcp.pop %v459
    %v476 = vrcp.pop %v460
    %477 = vrot.lane.b32.xlu0 %v461, 16
    %v478 = vpop.permute.xlu0 %477
    %479 = vrot.lane.b32.xlu0 %v465, 16
    %v480 = vpop.permute.xlu0 %479
    %481 = vrot.lane.b32.xlu0 %v469, 16
    %v482 = vpop.permute.xlu0 %481
    %483 = vrot.lane.b32.xlu0 %v473, 16
    %v484 = vpop.permute.xlu0 %483
    %485 = vrot.lane.b32.xlu0 %v462, 16
    %v486 = vpop.permute.xlu0 %485
    %487 = vrot.lane.b32.xlu0 %v466, 16
    %v488 = vpop.permute.xlu0 %487
    %489 = vrot.lane.b32.xlu0 %v470, 16
    %v490 = vpop.permute.xlu0 %489
    %491 = vrot.lane.b32.xlu0 %v474, 16
    %v492 = vpop.permute.xlu0 %491
    %493 = vrot.lane.b32.xlu0 %v463, 16
    %v494 = vpop.permute.xlu0 %493
    %495 = vrot.lane.b32.xlu0 %v467, 16
    %v496 = vpop.permute.xlu0 %495
    %497 = vrot.lane.b32.xlu0 %v471, 16
    %v498 = vpop.permute.xlu0 %497
    %499 = vrot.lane.b32.xlu0 %v475, 16
    %v500 = vpop.permute.xlu0 %499
    %501 = vrot.lane.b32.xlu0 %v464, 16
    %v502 = vpop.permute.xlu0 %501
    %503 = vrot.lane.b32.xlu0 %v468, 16
    %v504 = vpop.permute.xlu0 %503
    %505 = vrot.lane.b32.xlu0 %v472, 16
    %v506 = vpop.permute.xlu0 %505
    %507 = vrot.lane.b32.xlu0 %v476, 16
    %v508 = vpop.permute.xlu0 %507
    %v509 = vsel %vm99, %v494, %v502
    %v510 = vsel %vm99, %v496, %v504
    %v511 = vsel %vm99, %v498, %v506
    %v512 = vsel %vm99, %v500, %v508
    %v513 = vsel %vm99, %v486, %v494
    %v514 = vsel %vm99, %v488, %v496
    %v515 = vsel %vm99, %v490, %v498
    %v516 = vsel %vm99, %v492, %v500
    %v517 = vsel %vm99, %v478, %v486
    %v518 = vsel %vm99, %v480, %v488
    %v519 = vsel %vm99, %v482, %v490
    %v520 = vsel %vm99, %v484, %v492
    %v521 = vsel %vm99, %v502, %v478
    %v522 = vsel %vm99, %v504, %v480
    %v523 = vsel %vm99, %v506, %v482
    %v524 = vsel %vm99, %v508, %v484
    %v525 = vsel %vm108, %v521, 0.0
    %v526 = vsel %vm109, %v517, 0.0
    %v527 = vsel %vm110, %v513, 0.0
    %v528 = vsel %vm111, %v509, 0.0
    %v529 = vsel %vm108, %v522, 0.0
    %v530 = vsel %vm109, %v518, 0.0
    %v531 = vsel %vm110, %v514, 0.0
    %v532 = vsel %vm111, %v510, 0.0
    %v533 = vsel %vm108, %v523, 0.0
    %v534 = vsel %vm109, %v519, 0.0
    %v535 = vsel %vm110, %v515, 0.0
    %v536 = vsel %vm111, %v511, 0.0
    %v537 = vsel %vm108, %v524, 0.0
    %v538 = vsel %vm109, %v520, 0.0
    %v539 = vsel %vm110, %v516, 0.0
    %v540 = vsel %vm111, %v512, 0.0
    %541 = vst [vmem:[#allocation3] sm:$0xff] %v525
    %542 = vst [vmem:[#allocation3 + $0x8] sm:$0xff] %v526
    %543 = vst [vmem:[#allocation3 + $0x10] sm:$0xff] %v527
    %544 = vst [vmem:[#allocation3 + $0x18] sm:$0xff] %v528
    %545 = vst [vmem:[#allocation3 + $0x20] sm:$0xff] %v529
    %546 = vst [vmem:[#allocation3 + $0x28] sm:$0xff] %v530
    %547 = vst [vmem:[#allocation3 + $0x30] sm:$0xff] %v531
    %548 = vst [vmem:[#allocation3 + $0x38] sm:$0xff] %v532
    %549 = vst [vmem:[#allocation3 + $0x40] sm:$0xff] %v533
    %550 = vst [vmem:[#allocation3 + $0x48] sm:$0xff] %v534
    %551 = vst [vmem:[#allocation3 + $0x50] sm:$0xff] %v535
    %552 = vst [vmem:[#allocation3 + $0x58] sm:$0xff] %v536
    %553 = vst [vmem:[#allocation3 + $0x60] sm:$0xff] %v537
    %554 = vst [vmem:[#allocation3 + $0x68] sm:$0xff] %v538
    %555 = vst [vmem:[#allocation3 + $0x70] sm:$0xff] %v539
    %556 = vst [vmem:[#allocation3 + $0x78] sm:$0xff] %v540
    %557 = vst [vmem:[#allocation3 + $0x80] sm:$0xff] %v461
    %558 = vst [vmem:[#allocation3 + $0x88] sm:$0xff] %v462
    %559 = vst [vmem:[#allocation3 + $0x90] sm:$0xff] %v463
    %560 = vst [vmem:[#allocation3 + $0x98] sm:$0xff] %v464
    %561 = vst [vmem:[#allocation3 + $0xa0] sm:$0xff] %v465
    %562 = vst [vmem:[#allocation3 + $0xa8] sm:$0xff] %v466
    %563 = vst [vmem:[#allocation3 + $0xb0] sm:$0xff] %v467
    %564 = vst [vmem:[#allocation3 + $0xb8] sm:$0xff] %v468
    %565 = vst [vmem:[#allocation3 + $0xc0] sm:$0xff] %v469
    %566 = vst [vmem:[#allocation3 + $0xc8] sm:$0xff] %v470
    %567 = vst [vmem:[#allocation3 + $0xd0] sm:$0xff] %v471
    %568 = vst [vmem:[#allocation3 + $0xd8] sm:$0xff] %v472
    %569 = vst [vmem:[#allocation3 + $0xe0] sm:$0xff] %v473
    %570 = vst [vmem:[#allocation3 + $0xe8] sm:$0xff] %v474
    %571 = vst [vmem:[#allocation3 + $0xf0] sm:$0xff] %v475
    %572 = vst [vmem:[#allocation3 + $0xf8] sm:$0xff] %v476
    %573 = vrot.lane.b32.xlu0 %v461, 112
    %v574 = vpop.permute.xlu0 %573
    %575 = vrot.lane.b32.xlu0 %v465, 112
    %v576 = vpop.permute.xlu0 %575
    %577 = vrot.lane.b32.xlu0 %v469, 112
    %v578 = vpop.permute.xlu0 %577
    %579 = vrot.lane.b32.xlu0 %v473, 112
    %v580 = vpop.permute.xlu0 %579
    %581 = vrot.lane.b32.xlu0 %v462, 112
    %v582 = vpop.permute.xlu0 %581
    %583 = vrot.lane.b32.xlu0 %v466, 112
    %v584 = vpop.permute.xlu0 %583
    %585 = vrot.lane.b32.xlu0 %v470, 112
    %v586 = vpop.permute.xlu0 %585
    %587 = vrot.lane.b32.xlu0 %v474, 112
    %v588 = vpop.permute.xlu0 %587
    %589 = vrot.lane.b32.xlu0 %v463, 112
    %v590 = vpop.permute.xlu0 %589
    %591 = vrot.lane.b32.xlu0 %v467, 112
    %v592 = vpop.permute.xlu0 %591
    %593 = vrot.lane.b32.xlu0 %v471, 112
    %v594 = vpop.permute.xlu0 %593
    %595 = vrot.lane.b32.xlu0 %v475, 112
    %v596 = vpop.permute.xlu0 %595
    %597 = vrot.lane.b32.xlu0 %v464, 112
    %v598 = vpop.permute.xlu0 %597
    %599 = vrot.lane.b32.xlu0 %v468, 112
    %v600 = vpop.permute.xlu0 %599
    %601 = vrot.lane.b32.xlu0 %v472, 112
    %v602 = vpop.permute.xlu0 %601
    %603 = vrot.lane.b32.xlu0 %v476, 112
    %v604 = vpop.permute.xlu0 %603
    %v605 = vsel %vm136, %v590, %v598
    %v606 = vsel %vm136, %v592, %v600
    %v607 = vsel %vm136, %v594, %v602
    %v608 = vsel %vm136, %v596, %v604
    %v609 = vsel %vm136, %v582, %v590
    %v610 = vsel %vm136, %v584, %v592
    %v611 = vsel %vm136, %v586, %v594
    %v612 = vsel %vm136, %v588, %v596
    %v613 = vsel %vm136, %v574, %v582
    %v614 = vsel %vm136, %v576, %v584
    %v615 = vsel %vm136, %v578, %v586
    %v616 = vsel %vm136, %v580, %v588
    %v617 = vsel %vm136, %v598, %v574
    %v618 = vsel %vm136, %v600, %v576
    %v619 = vsel %vm136, %v602, %v578
    %v620 = vsel %vm136, %v604, %v580
    %v621 = vsel %vm145, %v613, 0.0
    %v622 = vsel %vm146, %v609, 0.0
    %v623 = vsel %vm147, %v605, 0.0
    %v624 = vsel %vm148, %v617, 0.0
    %v625 = vsel %vm145, %v614, 0.0
    %v626 = vsel %vm146, %v610, 0.0
    %v627 = vsel %vm147, %v606, 0.0
    %v628 = vsel %vm148, %v618, 0.0
    %v629 = vsel %vm145, %v615, 0.0
    %v630 = vsel %vm146, %v611, 0.0
    %v631 = vsel %vm147, %v607, 0.0
    %v632 = vsel %vm148, %v619, 0.0
    %v633 = vsel %vm145, %v616, 0.0
    %v634 = vsel %vm146, %v612, 0.0
    %v635 = vsel %vm147, %v608, 0.0
    %v636 = vsel %vm148, %v620, 0.0
    %637 = vst [vmem:[#allocation3 + $0x100] sm:$0xff] %v621
    %638 = vst [vmem:[#allocation3 + $0x108] sm:$0xff] %v622
    %639 = vst [vmem:[#allocation3 + $0x110] sm:$0xff] %v623
    %640 = vst [vmem:[#allocation3 + $0x118] sm:$0xff] %v624
    %641 = vst [vmem:[#allocation3 + $0x120] sm:$0xff] %v625
    %642 = vst [vmem:[#allocation3 + $0x128] sm:$0xff] %v626
    %643 = vst [vmem:[#allocation3 + $0x130] sm:$0xff] %v627
    %644 = vst [vmem:[#allocation3 + $0x138] sm:$0xff] %v628
    %645 = vst [vmem:[#allocation3 + $0x140] sm:$0xff] %v629
    %646 = vst [vmem:[#allocation3 + $0x148] sm:$0xff] %v630
    %647 = vst [vmem:[#allocation3 + $0x150] sm:$0xff] %v631
    %648 = vst [vmem:[#allocation3 + $0x158] sm:$0xff] %v632
    %649 = vst [vmem:[#allocation3 + $0x160] sm:$0xff] %v633
    %650 = vst [vmem:[#allocation3 + $0x168] sm:$0xff] %v634
    %651 = vst [vmem:[#allocation3 + $0x170] sm:$0xff] %v635
    %652 = vst [vmem:[#allocation3 + $0x178] sm:$0xff] %v636
    %v653 = vld [vmem:[%s3] sm:$0x1]
    %v654 = vld [vmem:[#allocation3] sm:$0xff]
    %v655 = vld [vmem:[#allocation3 + $0x8] sm:$0xff]
    %v656 = vld [vmem:[#allocation3 + $0x10] sm:$0xff]
    %v657 = vld [vmem:[#allocation3 + $0x18] sm:$0xff]
    %v658 = vld [vmem:[#allocation3 + $0x20] sm:$0xff]
    %v659 = vld [vmem:[#allocation3 + $0x28] sm:$0xff]
    %v660 = vld [vmem:[#allocation3 + $0x30] sm:$0xff]
    %v661 = vld [vmem:[#allocation3 + $0x38] sm:$0xff]
    %v662 = vld [vmem:[#allocation3 + $0x40] sm:$0xff]
    %v663 = vld [vmem:[#allocation3 + $0x48] sm:$0xff]
    %v664 = vld [vmem:[#allocation3 + $0x50] sm:$0xff]
    %v665 = vld [vmem:[#allocation3 + $0x58] sm:$0xff]
    %v666 = vld [vmem:[#allocation3 + $0x60] sm:$0xff]
    %v667 = vld [vmem:[#allocation3 + $0x68] sm:$0xff]
    %v668 = vld [vmem:[#allocation3 + $0x70] sm:$0xff]
    %v669 = vld [vmem:[#allocation3 + $0x78] sm:$0xff]
    %v670 = vld [vmem:[#allocation3 + $0x80] sm:$0xff]
    %v671 = vld [vmem:[#allocation3 + $0x88] sm:$0xff]
    %v672 = vld [vmem:[#allocation3 + $0x90] sm:$0xff]
    %v673 = vld [vmem:[#allocation3 + $0x98] sm:$0xff]
    %v674 = vld [vmem:[#allocation3 + $0xa0] sm:$0xff]
    %v675 = vld [vmem:[#allocation3 + $0xa8] sm:$0xff]
    %v676 = vld [vmem:[#allocation3 + $0xb0] sm:$0xff]
    %v677 = vld [vmem:[#allocation3 + $0xb8] sm:$0xff]
    %v678 = vld [vmem:[#allocation3 + $0xc0] sm:$0xff]
    %v679 = vld [vmem:[#allocation3 + $0xc8] sm:$0xff]
    %v680 = vld [vmem:[#allocation3 + $0xd0] sm:$0xff]
    %v681 = vld [vmem:[#allocation3 + $0xd8] sm:$0xff]
    %v682 = vld [vmem:[#allocation3 + $0xe0] sm:$0xff]
    %v683 = vld [vmem:[#allocation3 + $0xe8] sm:$0xff]
    %v684 = vld [vmem:[#allocation3 + $0xf0] sm:$0xff]
    %v685 = vld [vmem:[#allocation3 + $0xf8] sm:$0xff]
    %v686 = vld [vmem:[#allocation3 + $0x100] sm:$0xff]
    %v687 = vld [vmem:[#allocation3 + $0x108] sm:$0xff]
    %v688 = vld [vmem:[#allocation3 + $0x110] sm:$0xff]
    %v689 = vld [vmem:[#allocation3 + $0x118] sm:$0xff]
    %v690 = vld [vmem:[#allocation3 + $0x120] sm:$0xff]
    %v691 = vld [vmem:[#allocation3 + $0x128] sm:$0xff]
    %v692 = vld [vmem:[#allocation3 + $0x130] sm:$0xff]
    %v693 = vld [vmem:[#allocation3 + $0x138] sm:$0xff]
    %v694 = vld [vmem:[#allocation3 + $0x140] sm:$0xff]
    %v695 = vld [vmem:[#allocation3 + $0x148] sm:$0xff]
    %v696 = vld [vmem:[#allocation3 + $0x150] sm:$0xff]
    %v697 = vld [vmem:[#allocation3 + $0x158] sm:$0xff]
    %v698 = vld [vmem:[#allocation3 + $0x160] sm:$0xff]
    %v699 = vld [vmem:[#allocation3 + $0x168] sm:$0xff]
    %v700 = vld [vmem:[#allocation3 + $0x170] sm:$0xff]
    %v701 = vld [vmem:[#allocation3 + $0x178] sm:$0xff]
    %s702 = sld [smem:[#allocation4]]
    %v703 = vstv %s702
    %vm704 = vcmask 785408
    %v706 = vsel %vm704, %v653, 0
    %708 = vmatprep.subr.mxu0 %v655
    %709 = vmatpush1.msra.mxu0 %v654
    %710 = vmatprep.subr.mxu0 %v659
    %711 = vmatpush1.msra.mxu0 %v658
    %712 = vmatprep.subr.mxu0 %v663
    %713 = vmatpush1.msra.mxu0 %v662
    %714 = vmatprep.subr.mxu0 %v667
    %715 = vmatpush1.msra.mxu0 %v666
    %716 = vmatprep.subr.mxu0 %v671
    %717 = vmatpush1.msra.mxu0 %v670
    %718 = vmatprep.subr.mxu0 %v675
    %719 = vmatpush1.msra.mxu0 %v674
    %720 = vmatprep.subr.mxu0 %v679
    %721 = vmatpush1.msra.mxu0 %v678
    %722 = vmatprep.subr.mxu0 %v683
    %723 = vmatpush1.msra.mxu0 %v682
    %724 = vmatprep.subr.mxu0 %v687
    %725 = vmatpush1.msra.mxu0 %v686
    %726 = vmatprep.subr.mxu0 %v691
    %727 = vmatpush1.msra.mxu0 %v690
    %728 = vmatprep.subr.mxu0 %v695
    %729 = vmatpush1.msra.mxu0 %v694
    %730 = vmatprep.subr.mxu0 %v699
    %731 = vmatpush1.msra.mxu0 %v698
    %732 = vmatprep.subr.mxu0 0.0
    %733 = vmatpush1.msra.mxu0 0.0
    %734 = vmatprep.subr.mxu0 0.0
    %735 = vmatpush1.msra.mxu0 0.0
    %736 = vmatprep.subr.mxu0 0.0
    %737 = vmatpush1.msra.mxu0 0.0
    %738 = vmatprep.subr.mxu0 0.0
    %739 = vmatpush1.msra.mxu0 0.0
    %740 = vmatprep.subr.mxu0 0.0
    %741 = vmatpush1.msra.mxu0 0.0
    %742 = vmatprep.subr.mxu0 0.0
    %743 = vmatpush1.msra.mxu0 0.0
    %744 = vmatprep.subr.mxu0 0.0
    %745 = vmatpush1.msra.mxu0 0.0
    %746 = vmatprep.subr.mxu0 0.0
    %747 = vmatpush1.msra.mxu0 0.0
    %748 = vmatprep.subr.mxu0 0.0
    %749 = vmatpush1.msra.mxu0 0.0
    %750 = vmatprep.subr.mxu0 0.0
    %751 = vmatpush1.msra.mxu0 0.0
    %752 = vmatprep.subr.mxu0 0.0
    %753 = vmatpush1.msra.mxu0 0.0
    %754 = vmatprep.subr.mxu0 0.0
    %755 = vmatpush1.msra.mxu0 0.0
    %756 = vmatprep.subr.mxu0 0.0
    %757 = vmatpush1.msra.mxu0 0.0
    %758 = vmatprep.subr.mxu0 0.0
    %759 = vmatpush1.msra.mxu0 0.0
    %760 = vmatprep.subr.mxu0 0.0
    %761 = vmatpush1.msra.mxu0 0.0
    %762 = vmatprep.subr.mxu0 0.0
    %763 = vmatpush1.msra.mxu0 0.0
    %764 = vmatprep.subr.mxu0 0.0
    %765 = vmatpush1.msra.mxu0 0.0
    %766 = vmatprep.subr.mxu0 0.0
    %767 = vmatpush1.msra.mxu0 0.0
    %768 = vmatprep.subr.mxu0 0.0
    %769 = vmatpush1.msra.mxu0 0.0
    %770 = vmatprep.subr.mxu0 0.0
    %771 = vmatpush1.msra.mxu0 0.0
    %772 = vmatprep.mubr.f32.mxu0 0.0
    %773 = vmatmul.mubr.f32.gmra.mrb[0].mxu0 %v706
    %v774 = vpop.f32.mrb[0].mxu0
    %v775 = vadd.f32 %v703, %v774
    %v776 = vpop.f32.mrb[0].mxu0
    %v777 = vadd.f32 %v703, %v776
    %778 = vdwg.mxu0
    %779 = vmatprep.subr.mxu0 %v657
    %780 = vmatpush1.msra.mxu0 %v656
    %781 = vmatprep.subr.mxu0 %v661
    %782 = vmatpush1.msra.mxu0 %v660
    %783 = vmatprep.subr.mxu0 %v665
    %784 = vmatpush1.msra.mxu0 %v664
    %785 = vmatprep.subr.mxu0 %v669
    %786 = vmatpush1.msra.mxu0 %v668
    %787 = vmatprep.subr.mxu0 %v673
    %788 = vmatpush1.msra.mxu0 %v672
    %789 = vmatprep.subr.mxu0 %v677
    %790 = vmatpush1.msra.mxu0 %v676
    %791 = vmatprep.subr.mxu0 %v681
    %792 = vmatpush1.msra.mxu0 %v680
    %793 = vmatprep.subr.mxu0 %v685
    %794 = vmatpush1.msra.mxu0 %v684
    %795 = vmatprep.subr.mxu0 %v689
    %796 = vmatpush1.msra.mxu0 %v688
    %797 = vmatprep.subr.mxu0 %v693
    %798 = vmatpush1.msra.mxu0 %v692
    %799 = vmatprep.subr.mxu0 %v697
    %800 = vmatpush1.msra.mxu0 %v696
    %801 = vmatprep.subr.mxu0 %v701
    %802 = vmatpush1.msra.mxu0 %v700
    %803 = vmatprep.subr.mxu0 0.0
    %804 = vmatpush1.msra.mxu0 0.0
    %805 = vmatprep.subr.mxu0 0.0
    %806 = vmatpush1.msra.mxu0 0.0
    %807 = vmatprep.subr.mxu0 0.0
    %808 = vmatpush1.msra.mxu0 0.0
    %809 = vmatprep.subr.mxu0 0.0
    %810 = vmatpush1.msra.mxu0 0.0
    %811 = vmatprep.subr.mxu0 0.0
    %812 = vmatpush1.msra.mxu0 0.0
    %813 = vmatprep.subr.mxu0 0.0
    %814 = vmatpush1.msra.mxu0 0.0
    %815 = vmatprep.subr.mxu0 0.0
    %816 = vmatpush1.msra.mxu0 0.0
    %817 = vmatprep.subr.mxu0 0.0
    %818 = vmatpush1.msra.mxu0 0.0
    %819 = vmatprep.subr.mxu0 0.0
    %820 = vmatpush1.msra.mxu0 0.0
    %821 = vmatprep.subr.mxu0 0.0
    %822 = vmatpush1.msra.mxu0 0.0
    %823 = vmatprep.subr.mxu0 0.0
    %824 = vmatpush1.msra.mxu0 0.0
    %825 = vmatprep.subr.mxu0 0.0
    %826 = vmatpush1.msra.mxu0 0.0
    %827 = vmatprep.subr.mxu0 0.0
    %828 = vmatpush1.msra.mxu0 0.0
    %829 = vmatprep.subr.mxu0 0.0
    %830 = vmatpush1.msra.mxu0 0.0
    %831 = vmatprep.subr.mxu0 0.0
    %832 = vmatpush1.msra.mxu0 0.0
    %833 = vmatprep.subr.mxu0 0.0
    %834 = vmatpush1.msra.mxu0 0.0
    %835 = vmatprep.subr.mxu0 0.0
    %836 = vmatpush1.msra.mxu0 0.0
    %837 = vmatprep.subr.mxu0 0.0
    %838 = vmatpush1.msra.mxu0 0.0
    %839 = vmatprep.subr.mxu0 0.0
    %840 = vmatpush1.msra.mxu0 0.0
    %841 = vmatprep.subr.mxu0 0.0
    %842 = vmatpush1.msra.mxu0 0.0
    %843 = vmatprep.mubr.f32.mxu0 0.0
    %844 = vmatmul.mubr.f32.gmra.mrb[0].mxu0 %v706
    %v845 = vpop.f32.mrb[0].mxu0
    %v846 = vadd.f32 %v703, %v845
    %v847 = vpop.f32.mrb[0].mxu0
    %v848 = vadd.f32 %v703, %v847
    %849 = vdwg.mxu0
    %v850 = vsub.f32 0.0, %v775
    %v851 = vsub.f32 0.0, %v777
    %v852 = vsub.f32 0.0, %v846
    %v853 = vsub.f32 0.0, %v848
    %v854 = vmul.f32 %v850, 1.442695
    %v855 = vpow.pop %v854
    %v856 = vmul.f32 %v851, 1.442695
    %v857 = vpow.pop %v856
    %v858 = vmul.f32 %v852, 1.442695
    %v859 = vpow.pop %v858
    %v860 = vmul.f32 %v853, 1.442695
    %v861 = vpow.pop %v860
    %v862 = vadd.f32 %v855, 1.0
    %v863 = vadd.f32 %v857, 1.0
    %v864 = vadd.f32 %v859, 1.0
    %v865 = vadd.f32 %v861, 1.0
    %v866 = vrcp.pop %v862
    %v867 = vrcp.pop %v863
    %v868 = vrcp.pop %v864
    %v869 = vrcp.pop %v865
    %v870 = vlaneseq
    %v871 = vshrl.u32 %v870, 7
    %v872 = vsub.s32 0, %v871
    %v873 = vrot.slane %v866, %v872
    %v874 = vlaneseq
    %v875 = vshrl.u32 %v874, 7
    %v876 = vsub.s32 0, %v875
    %v877 = vrot.slane %v867, %v876
    %v878 = vlaneseq
    %v879 = vshrl.u32 %v878, 7
    %v880 = vsub.s32 0, %v879
    %v881 = vrot.slane %v868, %v880
    %v882 = vlaneseq
    %v883 = vshrl.u32 %v882, 7
    %v884 = vsub.s32 0, %v883
    %v885 = vrot.slane %v869, %v884
    %v890 = vcombine.low %v873, %v877
    %v891 = vcombine.low %v881, %v885
    %v894 = vmul.f32 %v22, %v890
    %v895 = vmul.f32 %v23, %v891
    %896 = vst [vmem:[#allocation5] sm:$0xff] %v894
    %897 = vst [vmem:[#allocation5 + $0x8] sm:$0xff] %v895
    // Predicated region
    $region22: #{tpu_custom_call.1} parent=1 // pred_check
      _
    $region23: #{tpu_custom_call.1} parent=1 // pred_check_branch
      %899 = sbr.rel (0) target = $region25
    $region24: #{tpu_custom_call.1} parent=1 // pred_region
      %s901 = ssub.s32 256, 256
      %902 = vsyncadd [#allocation6], %s901
      %s904 = sshll.u32 [#allocation5], 4
      %s905 = int_to_ptr.vmem [resolvable:$true] %s904
      %907 = dma.vmem_to_hbm [thread:$0]  %s905, 256, %s5, [#allocation6]
    $region25: #{tpu_custom_call.1} parent=1 // pred_fallthru
      _
    // Predicated region
    $region26: #{tpu_custom_call.1} parent=1 // pred_check
      _
    $region27: #{tpu_custom_call.1} parent=1 // pred_check_branch
      %909 = sbr.rel (0) target = $region29
    $region28: #{tpu_custom_call.1} parent=1 // pred_region
      %910 = dma.done [#allocation6], 256
    $region29: #{tpu_custom_call.1} parent=1 // pred_fallthru
      _
    %911 = vsyncpa [#allocation6], 1

</llo_original>
